<compile_context>
chip_gen: v7x
topology: tpu7x:2x2x1
jax: 0.10.0
libtpu: 0.0.40
codegen_flags: <defaults>
</compile_context>

<pallas_src>
import functools

import jax
import jax.numpy as jnp
import numpy as np
from jax.experimental import pallas as pl
from jax.experimental.pallas import tpu as pltpu


_MASK_BIAS = -1e30  # finite "-inf" used inside the kernel (keeps context finite)


def _round_up(x, m):
    return (x + m - 1) // m * m


def _bahdanau_kernel(pq_ref, bias_ref, v_ref, wkT_ref, we_ref,
                     scores_ref, ctx_ref, m_scr, l_scr, acc_scr, *,
                     energy_dtype):
    """One grid step == (batch block b, S tile s).

    pq_ref    : (1, BB, 1, H)  f32   pre-computed query projection
    bias_ref  : (1, BB, ts)    f32   additive mask bias (0 valid / -1e30 invalid)
    v_ref     : (1, BB, ts, K) f32   encoder states (keys == values), native dtype
    wkT_ref   : (K, H)         bf16  key projection weight, pre-transposed
    we_ref    : (1, H)         f32   energy layer weight
    scores_ref: (1, BB, ts)    f32   masked scores (softmaxed in the wrapper)
    ctx_ref   : (1, BB, K)     f32   context output (written on last S step)
    m/l/acc   : VMEM scratch         online-softmax running state
    """
    s_idx = pl.program_id(1)
    n_s = pl.num_programs(1)

    @pl.when(s_idx == 0)
    def _init():
        m_scr[...] = jnp.full_like(m_scr, -jnp.inf)
        l_scr[...] = jnp.zeros_like(l_scr)
        acc_scr[...] = jnp.zeros_like(acc_scr)

    _, BB, ts, K = v_ref.shape
    H = wkT_ref.shape[1]

    v = v_ref[0]                                        # (BB, ts, K) f32
    pq = pq_ref[0]                                      # (BB, 1, H)  f32
    bias = bias_ref[0]                                  # (BB, ts)    f32
    we_row = we_ref[...].astype(energy_dtype)           # (1, H)

    # Key projection: one fused MXU matmul over all BB*ts rows.  The f32->bf16
    # cast happens here (VPU), so HBM only ever streams values once, in f32.
    # ts is kept a multiple of 8, so this reshape is a free relayout.
    v_flat = v.reshape(BB * ts, K)
    pk = jnp.dot(v_flat.astype(wkT_ref.dtype), wkT_ref[...],
                 preferred_element_type=jnp.float32)     # (BB*ts, H)
    pk = pk.reshape(BB, ts, H)

    # Energy = We . tanh(pk + pq); lane-reduce over H (no transposes).
    t = jnp.tanh((pk + pq).astype(energy_dtype))         # (BB, ts, H)
    scores = jnp.sum((t * we_row[None, :, :]).astype(jnp.float32),
                     axis=-1) + bias                      # (BB, ts)
    scores_ref[0] = scores

    # Online-softmax update of the context accumulator over S tiles.
    m_prev = m_scr[...]                                   # (BB, 1)
    m_new = jnp.maximum(m_prev, jnp.max(scores, axis=-1, keepdims=True))
    corr = jnp.exp(m_prev - m_new)                        # (BB, 1)
    p = jnp.exp(scores - m_new)                           # (BB, ts)
    l_scr[...] = corr * l_scr[...] + jnp.sum(p, axis=-1, keepdims=True)
    # Context partial sum: f32 operands keep context at encoder-state precision.
    pv = jnp.einsum('bqs,bsk->bqk', p.reshape(BB, 1, ts), v,
                    preferred_element_type=jnp.float32)   # (BB, 1, K)
    acc_scr[...] = corr * acc_scr[...] + pv.reshape(BB, K)
    m_scr[...] = m_new

    @pl.when(s_idx == n_s - 1)
    def _finalize():
        ctx_ref[0] = acc_scr[...] * pl.reciprocal(l_scr[...], approx=True)


def _pick_tiling(B, S, K, H, *, block_b=None, block_s=None):
    """Choose (s_tile, batch_block, padded_S, vmem_limit) from the actual chip."""
    try:
        cap = int(pltpu.get_tpu_info().vmem_capacity_bytes)
    except Exception:
        cap = 64 * 1024 * 1024                       # conservative (v7x-sized)
    try:
        kind = jax.devices()[0].device_kind.lower()
    except Exception:
        kind = ""
    two_cores = "v7" in kind                         # only v7x has 2 TCs/chip

    budget = int(cap * 0.40)                         # explicit pipelined blocks
    vmem_limit = min(cap, max(32 * 1024 * 1024, int(cap * 0.80)))

    def footprint(bb, ts):
        vals = 2 * bb * ts * K * 4                   # f32 values, double-buffered
        bias_scores = 4 * bb * ts * 4                # bias in + scores out, x2
        pq = 2 * bb * H * 4
        weights = 2 * (K * H * 2 + H * 4)            # wkT(bf16) + we(f32), x2
        ctx = 2 * bb * K * 4
        scratch = bb * (K + 2) * 4
        interm = 3 * bb * ts * H * 4                 # pk / tanh / product temps
        return vals + bias_scores + pq + weights + ctx + scratch + interm

    # ---- S tile: whole (8-padded) sequence if it fits, else 128-aligned tiles.
    s8 = _round_up(S, 8)
    if block_s is not None:
        ts = block_s
    elif footprint(1, s8) <= budget:
        ts = s8
    else:
        ts = 128
        while ts * 2 < s8 and footprint(1, ts * 2) <= budget:
            ts *= 2
    s_pad = _round_up(S, ts)
    assert ts % 8 == 0 and s_pad % ts == 0

    # ---- batch block: largest divisor of B that fits the budget.
    if block_b is not None:
        bb = block_b
    else:
        bb = 1
        for d in range(1, B + 1):
            if B % d == 0 and footprint(d, ts) <= budget:
                bb = d
        if two_cores and B >= 2:                     # keep both v7x TCs busy
            bb = min(bb, B // 2)
            while B % bb:
                bb -= 1
    assert B % bb == 0
    return ts, bb, s_pad, vmem_limit


def bahdanau_attention(query, mask, values, wk, wq, we, *,
                       block_b=None, block_s=None,
                       mxu_dtype=jnp.bfloat16, energy_dtype=jnp.float32):
    """Bahdanau MLP attention forward.

    query  : (B, 1, Q) f32   decoder state
    mask   : (B, 1, S) int   0 = invalid position, 1 = valid
    values : (B, S, K) f32   encoder states (keys == values)
    wk     : (H, K) f32      key_layer.weight   (PyTorch (out, in) layout)
    wq     : (H, Q) f32      query_layer.weight
    we     : (1, H) f32      energy_layer.weight

    Returns (context (B, 1, K) f32, alphas (B, 1, S) f32).
    """
    B, S, K = values.shape
    H = wk.shape[0]
    f32 = jnp.float32

    ts, bb, s_pad, vmem_limit = _pick_tiling(B, S, K, H,
                                             block_b=block_b, block_s=block_s)
    nb = B // bb
    n_s = s_pad // ts

    # ---- cheap one-time XLA-side prep (no cast/copy of the values operand) ----
    proj_query = jnp.einsum('bqd,hd->bqh', query.astype(f32), wq.astype(f32))
    proj_query = proj_query.reshape(nb, bb, 1, H)

    bias2d = jnp.where(mask[:, 0, :] == 0, f32(_MASK_BIAS), f32(0.0))
    v_in = values.astype(f32)                        # no-op when already f32
    if s_pad != S:                                   # pad only when S needs rounding
        v_in = jnp.pad(v_in, ((0, 0), (0, s_pad - S), (0, 0)))
        bias2d = jnp.pad(bias2d, ((0, 0), (0, s_pad - S)),
                         constant_values=_MASK_BIAS)
    v_blk = v_in.reshape(nb, bb, s_pad, K)
    bias_blk = bias2d.reshape(nb, bb, s_pad)

    wkT = wk.T.astype(mxu_dtype)                     # (K, H), tiny
    we_row = we.astype(f32)                          # (1, H)

    kernel = functools.partial(_bahdanau_kernel, energy_dtype=energy_dtype)

    scores_out, ctx_out = pl.pallas_call(
        kernel,
        out_shape=(
            jax.ShapeDtypeStruct((nb, bb, s_pad), f32),   # masked scores
            jax.ShapeDtypeStruct((nb, bb, K), f32),        # context slab
        ),
        grid_spec=pltpu.PrefetchScalarGridSpec(
            num_scalar_prefetch=0,
            grid=(nb, n_s),
            in_specs=[
                pl.BlockSpec((1, bb, 1, H), lambda b, s: (b, 0, 0, 0)),   # proj_q
                pl.BlockSpec((1, bb, ts), lambda b, s: (b, 0, s)),        # bias
                pl.BlockSpec((1, bb, ts, K), lambda b, s: (b, 0, s, 0)),  # values
                pl.BlockSpec((K, H), lambda b, s: (0, 0)),                # Wk^T
                pl.BlockSpec((1, H), lambda b, s: (0, 0)),                # We
            ],
            out_specs=(
                pl.BlockSpec((1, bb, ts), lambda b, s: (b, 0, s)),        # scores
                pl.BlockSpec((1, bb, K), lambda b, s: (b, 0, 0)),         # context
            ),
            scratch_shapes=[
                pltpu.VMEM((bb, 1), f32),    # running max
                pltpu.VMEM((bb, 1), f32),    # running denominator
                pltpu.VMEM((bb, K), f32),    # running context accumulator
            ],
        ),
        compiler_params=pltpu.CompilerParams(
            dimension_semantics=("parallel", "arbitrary"),
            vmem_limit_bytes=vmem_limit,
        ),
    )(proj_query, bias_blk, v_blk, wkT, we_row)

    # Tiny O(B*S) epilogue: exact PyTorch masked_fill(-inf) + softmax for alphas.
    scores = scores_out.reshape(B, 1, s_pad)[:, :, :S]
    scores = jnp.where(mask == 0, -jnp.inf, scores)
    alphas = jax.nn.softmax(scores, axis=-1)
    context = ctx_out.reshape(B, 1, K)
    return context, alphas


def _reference(query, mask, values, wk, wq, we):
    proj_keys = jnp.einsum('bsk,hk->bsh', values, wk)
    proj_query = jnp.einsum('bqd,hd->bqh', query, wq)
    t = jnp.tanh(proj_keys + proj_query)                 # (B, S, H)
    scores = jnp.einsum('bsh,oh->bso', t, we)            # (B, S, 1)
    scores = jnp.transpose(scores, (0, 2, 1))            # (B, 1, S)
    scores = jnp.where(mask == 0, -jnp.inf, scores)
    alphas = jax.nn.softmax(scores, axis=-1)
    context = jnp.einsum('bqs,bsk->bqk', alphas, values)
    return context, alphas


if __name__ == "__main__":
    # query_size == hidden_size per the module assertion.
    B, S, H, K, Q = 4, 16, 32, 32, 32

    key = jax.random.PRNGKey(0)
    k1, k2, k3, k4, k5 = jax.random.split(key, 5)

    query = jax.random.normal(k1, (B, 1, Q), dtype=jnp.float32)
    values = jax.random.normal(k2, (B, S, K), dtype=jnp.float32)

    mask = jnp.ones((B, 1, S), dtype=jnp.int32)
    mask = mask.at[0, 0, S - 3:].set(0)
    mask = mask.at[1, 0, S - 1:].set(0)
    mask = mask.at[3, 0, :2].set(0)

    # Deterministic nn.Linear-style (out, in) weights, no bias.
    wk = jax.random.normal(k3, (H, K), dtype=jnp.float32) / np.sqrt(K)
    wq = jax.random.normal(k4, (H, Q), dtype=jnp.float32) / np.sqrt(Q)
    we = jax.random.normal(k5, (1, H), dtype=jnp.float32) / np.sqrt(H)

    ctx, alphas = bahdanau_attention(query, mask, values, wk, wq, we)
    jax.block_until_ready((ctx, alphas))

    ctx_ref, alphas_ref = _reference(query, mask, values, wk, wq, we)
    # Tolerance covers bf16 MXU key projection + approx reciprocal in the kernel.
    np.testing.assert_allclose(np.asarray(alphas), np.asarray(alphas_ref),
                               rtol=2e-2, atol=2e-2)
    np.testing.assert_allclose(np.asarray(ctx), np.asarray(ctx_ref),
                               rtol=2e-2, atol=2e-2)

    print("KERNEL_OK")
</pallas_src>

<mosaic_0001>
module attributes {stable_mosaic.version = 11 : i64} {
  func.func @_bahdanau_kernel(%arg0: i32, %arg1: i32, %arg2: memref<1x4x1x32xf32, #tpu.memory_space<vmem>>, %arg3: memref<1x4x16xf32, #tpu.memory_space<vmem>>, %arg4: memref<1x4x16x32xf32, #tpu.memory_space<vmem>>, %arg5: memref<32x32xbf16, #tpu.memory_space<vmem>>, %arg6: memref<1x32xf32, #tpu.memory_space<vmem>>, %arg7: memref<1x4x16xf32, #tpu.memory_space<vmem>>, %arg8: memref<1x4x32xf32, #tpu.memory_space<vmem>>, %arg9: memref<4x1xf32, #tpu.memory_space<vmem>>, %arg10: memref<4x1xf32, #tpu.memory_space<vmem>>, %arg11: memref<4x32xf32, #tpu.memory_space<vmem>>) attributes {dimension_semantics = [#tpu.dimension_semantics<parallel>, #tpu.dimension_semantics<arbitrary>], iteration_bounds = array<i64: 1, 1>, scalar_prefetch = 0 : i64, scratch_operands = 3 : i64, tpu.core_type = #tpu.core_type<tc>, window_params = [{transform_indices = @transform_0, window_bounds = array<i64: 1, 4, 1, 32>}, {transform_indices = @transform_1, window_bounds = array<i64: 1, 4, 16>}, {transform_indices = @transform_2, window_bounds = array<i64: 1, 4, 16, 32>}, {pipeline_mode = #tpu.pipeline_mode<synchronous>, transform_indices = @transform_3, window_bounds = array<i64: 32, 32>}, {pipeline_mode = #tpu.pipeline_mode<synchronous>, transform_indices = @transform_4, window_bounds = array<i64: 1, 32>}, {transform_indices = @transform_5, window_bounds = array<i64: 1, 4, 16>}, {transform_indices = @transform_6, window_bounds = array<i64: 1, 4, 32>}]} {
    %c0_i32 = arith.constant 0 : i32
    %0 = arith.cmpi eq, %arg1, %c0_i32 : i32
    %1 = arith.extui %0 : i1 to i32
    %c0_i32_0 = arith.constant 0 : i32
    %2 = arith.cmpi ne, %1, %c0_i32_0 : i32
    scf.if %2 {
      %cst_36 = arith.constant 0xFF800000 : f32
      %53 = vector.broadcast %cst_36 : f32 to vector<4x1xf32>
      %c0_37 = arith.constant 0 : index
      %c0_38 = arith.constant 0 : index
      %54 = vector.load %arg9[%c0_37, %c0_38] : memref<4x1xf32, #tpu.memory_space<vmem>>, vector<4x1xf32>
      tpu.vector_store %arg9[%c0_37, %c0_38], %53 {strides = array<i32>} : memref<4x1xf32, #tpu.memory_space<vmem>>, vector<4x1xf32>,
      %cst_39 = arith.constant 0.000000e+00 : f32
      %55 = vector.broadcast %cst_39 : f32 to vector<4x1xf32>
      %c0_40 = arith.constant 0 : index
      %c0_41 = arith.constant 0 : index
      %56 = vector.load %arg10[%c0_40, %c0_41] : memref<4x1xf32, #tpu.memory_space<vmem>>, vector<4x1xf32>
      tpu.vector_store %arg10[%c0_40, %c0_41], %55 {strides = array<i32>} : memref<4x1xf32, #tpu.memory_space<vmem>>, vector<4x1xf32>,
      %cst_42 = arith.constant 0.000000e+00 : f32
      %57 = vector.broadcast %cst_42 : f32 to vector<4x32xf32>
      %c0_43 = arith.constant 0 : index
      %c0_44 = arith.constant 0 : index
      %58 = vector.load %arg11[%c0_43, %c0_44] : memref<4x32xf32, #tpu.memory_space<vmem>>, vector<4x32xf32>
      tpu.vector_store %arg11[%c0_43, %c0_44], %57 {strides = array<i32>} : memref<4x32xf32, #tpu.memory_space<vmem>>, vector<4x32xf32>,
    } else {
    }
    %c0 = arith.constant 0 : index
    %c0_1 = arith.constant 0 : index
    %c0_2 = arith.constant 0 : index
    %c0_3 = arith.constant 0 : index
    %3 = vector.load %arg4[%c0, %c0_1, %c0_2, %c0_3] : memref<1x4x16x32xf32, #tpu.memory_space<vmem>>, vector<1x4x16x32xf32>
    %4 = vector.shape_cast %3 : vector<1x4x16x32xf32> to vector<4x16x32xf32>
    %c0_4 = arith.constant 0 : index
    %c0_5 = arith.constant 0 : index
    %c0_6 = arith.constant 0 : index
    %c0_7 = arith.constant 0 : index
    %5 = vector.load %arg2[%c0_4, %c0_5, %c0_6, %c0_7] : memref<1x4x1x32xf32, #tpu.memory_space<vmem>>, vector<1x4x1x32xf32>
    %6 = vector.shape_cast %5 : vector<1x4x1x32xf32> to vector<4x1x32xf32>
    %c0_8 = arith.constant 0 : index
    %c0_9 = arith.constant 0 : index
    %c0_10 = arith.constant 0 : index
    %7 = vector.load %arg3[%c0_8, %c0_9, %c0_10] : memref<1x4x16xf32, #tpu.memory_space<vmem>>, vector<1x4x16xf32>
    %8 = vector.shape_cast %7 : vector<1x4x16xf32> to vector<4x16xf32>
    %c0_11 = arith.constant 0 : index
    %c0_12 = arith.constant 0 : index
    %9 = vector.load %arg6[%c0_11, %c0_12] : memref<1x32xf32, #tpu.memory_space<vmem>>, vector<1x32xf32>
    %10 = vector.shape_cast %4 : vector<4x16x32xf32> to vector<64x32xf32>
    %11 = arith.truncf %10 : vector<64x32xf32> to vector<64x32xbf16>
    %c0_13 = arith.constant 0 : index
    %c0_14 = arith.constant 0 : index
    %12 = vector.load %arg5[%c0_13, %c0_14] : memref<32x32xbf16, #tpu.memory_space<vmem>>, vector<32x32xbf16>
    %cst = arith.constant dense<0.000000e+00> : vector<64x32xf32>
    %13 = tpu.matmul %11, %12, %cst {dimension_numbers = #tpu.dot_dimension_numbers<[1], [0], [0], [1], [0, 0, 1, 1], [], []>} : vector<64x32xbf16>, vector<32x32xbf16>, vector<64x32xf32> -> vector<64x32xf32>
    %14 = vector.shape_cast %13 : vector<64x32xf32> to vector<4x16x32xf32>
    %15 = vector.broadcast %6 : vector<4x1x32xf32> to vector<4x16x32xf32>
    %16 = arith.addf %14, %15 : vector<4x16x32xf32>
    %17 = math.tanh %16 : vector<4x16x32xf32>
    %18 = vector.shape_cast %9 : vector<1x32xf32> to vector<1x1x32xf32>
    %19 = vector.broadcast %18 : vector<1x1x32xf32> to vector<4x16x32xf32>
    %20 = arith.mulf %17, %19 : vector<4x16x32xf32>
    %cst_15 = arith.constant dense<0.000000e+00> : vector<4x16xf32>
    %21 = vector.multi_reduction <add>, %20, %cst_15 [2] : vector<4x16x32xf32> to vector<4x16xf32>
    %22 = arith.addf %21, %8 : vector<4x16xf32>
    %c0_16 = arith.constant 0 : index
    %c0_17 = arith.constant 0 : index
    %c0_18 = arith.constant 0 : index
    %23 = vector.load %arg7[%c0_16, %c0_17, %c0_18] : memref<1x4x16xf32, #tpu.memory_space<vmem>>, vector<1x4x16xf32>
    %24 = vector.shape_cast %23 : vector<1x4x16xf32> to vector<4x16xf32>
    %25 = vector.shape_cast %22 : vector<4x16xf32> to vector<1x4x16xf32>
    tpu.vector_store %arg7[%c0_16, %c0_17, %c0_18], %25 {strides = array<i32>} : memref<1x4x16xf32, #tpu.memory_space<vmem>>, vector<1x4x16xf32>,
    %c0_19 = arith.constant 0 : index
    %c0_20 = arith.constant 0 : index
    %26 = vector.load %arg9[%c0_19, %c0_20] : memref<4x1xf32, #tpu.memory_space<vmem>>, vector<4x1xf32>
    %cst_21 = arith.constant dense<0xFF800000> : vector<4xf32>
    %27 = vector.multi_reduction <maximumf>, %22, %cst_21 [1] : vector<4x16xf32> to vector<4xf32>
    %28 = vector.shape_cast %27 : vector<4xf32> to vector<4x1xf32>
    %29 = arith.maximumf %26, %28 : vector<4x1xf32>
    %30 = arith.subf %26, %29 : vector<4x1xf32>
    %31 = math.exp %30 : vector<4x1xf32>
    %32 = vector.broadcast %29 : vector<4x1xf32> to vector<4x16xf32>
    %33 = arith.subf %22, %32 : vector<4x16xf32>
    %34 = math.exp %33 : vector<4x16xf32>
    %c0_22 = arith.constant 0 : index
    %c0_23 = arith.constant 0 : index
    %35 = vector.load %arg10[%c0_22, %c0_23] : memref<4x1xf32, #tpu.memory_space<vmem>>, vector<4x1xf32>
    %36 = arith.mulf %31, %35 : vector<4x1xf32>
    %cst_24 = arith.constant dense<0.000000e+00> : vector<4xf32>
    %37 = vector.multi_reduction <add>, %34, %cst_24 [1] : vector<4x16xf32> to vector<4xf32>
    %38 = vector.shape_cast %37 : vector<4xf32> to vector<4x1xf32>
    %39 = arith.addf %36, %38 : vector<4x1xf32>
    %c0_25 = arith.constant 0 : index
    %c0_26 = arith.constant 0 : index
    %40 = vector.load %arg10[%c0_25, %c0_26] : memref<4x1xf32, #tpu.memory_space<vmem>>, vector<4x1xf32>
    tpu.vector_store %arg10[%c0_25, %c0_26], %39 {strides = array<i32>} : memref<4x1xf32, #tpu.memory_space<vmem>>, vector<4x1xf32>,
    %41 = vector.shape_cast %34 : vector<4x16xf32> to vector<4x1x16xf32>
    "tpu.trace_start"() <{level = 10 : i32, message = "bqs,bsk->bqk"}> : () -> ()
    %cst_27 = arith.constant dense<0.000000e+00> : vector<4x1x32xf32>
    %42 = tpu.matmul %41, %4, %cst_27 {dimension_numbers = #tpu.dot_dimension_numbers<[2], [1], [1], [2], [0, 0, 0, 1, 1, 2], [0], [0]>} : vector<4x1x16xf32>, vector<4x16x32xf32>, vector<4x1x32xf32> -> vector<4x1x32xf32>
    "tpu.trace_stop"() : () -> ()
    %c0_28 = arith.constant 0 : index
    %c0_29 = arith.constant 0 : index
    %43 = vector.load %arg11[%c0_28, %c0_29] : memref<4x32xf32, #tpu.memory_space<vmem>>, vector<4x32xf32>
    %44 = vector.broadcast %31 : vector<4x1xf32> to vector<4x32xf32>
    %45 = arith.mulf %44, %43 : vector<4x32xf32>
    %46 = vector.shape_cast %42 : vector<4x1x32xf32> to vector<4x32xf32>
    %47 = arith.addf %45, %46 : vector<4x32xf32>
    %c0_30 = arith.constant 0 : index
    %c0_31 = arith.constant 0 : index
    %48 = vector.load %arg11[%c0_30, %c0_31] : memref<4x32xf32, #tpu.memory_space<vmem>>, vector<4x32xf32>
    tpu.vector_store %arg11[%c0_30, %c0_31], %47 {strides = array<i32>} : memref<4x32xf32, #tpu.memory_space<vmem>>, vector<4x32xf32>,
    %c0_32 = arith.constant 0 : index
    %c0_33 = arith.constant 0 : index
    %49 = vector.load %arg9[%c0_32, %c0_33] : memref<4x1xf32, #tpu.memory_space<vmem>>, vector<4x1xf32>
    tpu.vector_store %arg9[%c0_32, %c0_33], %29 {strides = array<i32>} : memref<4x1xf32, #tpu.memory_space<vmem>>, vector<4x1xf32>,
    %c0_i32_34 = arith.constant 0 : i32
    %50 = arith.cmpi eq, %arg1, %c0_i32_34 : i32
    %51 = arith.extui %50 : i1 to i32
    %c0_i32_35 = arith.constant 0 : i32
    %52 = arith.cmpi ne, %51, %c0_i32_35 : i32
    scf.if %52 {
      %c0_36 = arith.constant 0 : index
      %c0_37 = arith.constant 0 : index
      %53 = vector.load %arg11[%c0_36, %c0_37] : memref<4x32xf32, #tpu.memory_space<vmem>>, vector<4x32xf32>
      %c0_38 = arith.constant 0 : index
      %c0_39 = arith.constant 0 : index
      %54 = vector.load %arg10[%c0_38, %c0_39] : memref<4x1xf32, #tpu.memory_space<vmem>>, vector<4x1xf32>
      %55 = tpu.reciprocal %54 {approx = true} : vector<4x1xf32> -> vector<4x1xf32>
      %56 = vector.broadcast %55 : vector<4x1xf32> to vector<4x32xf32>
      %57 = arith.mulf %53, %56 : vector<4x32xf32>
      %c0_40 = arith.constant 0 : index
      %c0_41 = arith.constant 0 : index
      %c0_42 = arith.constant 0 : index
      %58 = vector.load %arg8[%c0_40, %c0_41, %c0_42] : memref<1x4x32xf32, #tpu.memory_space<vmem>>, vector<1x4x32xf32>
      %59 = vector.shape_cast %58 : vector<1x4x32xf32> to vector<4x32xf32>
      %60 = vector.shape_cast %57 : vector<4x32xf32> to vector<1x4x32xf32>
      tpu.vector_store %arg8[%c0_40, %c0_41, %c0_42], %60 {strides = array<i32>} : memref<1x4x32xf32, #tpu.memory_space<vmem>>, vector<1x4x32xf32>,
    } else {
    }
    return
  }
  func.func @transform_0(%arg0: i32, %arg1: i32) -> (i32, i32, i32, i32) {
    %c0_i32 = arith.constant 0 : i32
    %c0_i32_0 = arith.constant 0 : i32
    %c0_i32_1 = arith.constant 0 : i32
    %c0_i32_2 = arith.constant 0 : i32
    return %arg0, %c0_i32, %c0_i32_0, %c0_i32_1 : i32, i32, i32, i32
  }
  func.func @transform_1(%arg0: i32, %arg1: i32) -> (i32, i32, i32) {
    %c0_i32 = arith.constant 0 : i32
    %c0_i32_0 = arith.constant 0 : i32
    return %arg0, %c0_i32, %arg1 : i32, i32, i32
  }
  func.func @transform_2(%arg0: i32, %arg1: i32) -> (i32, i32, i32, i32) {
    %c0_i32 = arith.constant 0 : i32
    %c0_i32_0 = arith.constant 0 : i32
    %c0_i32_1 = arith.constant 0 : i32
    return %arg0, %c0_i32, %arg1, %c0_i32_0 : i32, i32, i32, i32
  }
  func.func @transform_3(%arg0: i32, %arg1: i32) -> (i32, i32) {
    %c0_i32 = arith.constant 0 : i32
    %c0_i32_0 = arith.constant 0 : i32
    %c0_i32_1 = arith.constant 0 : i32
    return %c0_i32, %c0_i32_0 : i32, i32
  }
  func.func @transform_4(%arg0: i32, %arg1: i32) -> (i32, i32) {
    %c0_i32 = arith.constant 0 : i32
    %c0_i32_0 = arith.constant 0 : i32
    %c0_i32_1 = arith.constant 0 : i32
    return %c0_i32, %c0_i32_0 : i32, i32
  }
  func.func @transform_5(%arg0: i32, %arg1: i32) -> (i32, i32, i32) {
    %c0_i32 = arith.constant 0 : i32
    %c0_i32_0 = arith.constant 0 : i32
    return %arg0, %c0_i32, %arg1 : i32, i32, i32
  }
  func.func @transform_6(%arg0: i32, %arg1: i32) -> (i32, i32, i32) {
    %c0_i32 = arith.constant 0 : i32
    %c0_i32_0 = arith.constant 0 : i32
    %c0_i32_1 = arith.constant 0 : i32
    return %arg0, %c0_i32, %c0_i32_0 : i32, i32, i32
  }
}

</mosaic_0001>

<llo_original>
// kernel: tpu_custom_call.1
$region0: #{tpu_custom_call.1}
  #allocation0 [shape = 'u32[]', space=smem, size = 0x4, offset = 0x4, fixed_abs, tag = 'smem constant byte address 0x4 - core index']
  #allocation1 [shape = 'u32[144,128]{1,0:T(1,128)}', space=vmem, size = 0x12000, scoped, tag = 'internal scratch']
  #allocation2 [shape = 'f32[4,1]{1,0:T(4,128)}', space=vmem, size = 0x800, scoped, tag = 'scratch operand']
  #allocation3 [shape = 'f32[4,1]{1,0:T(4,128)}', space=vmem, size = 0x800, scoped, tag = 'scratch operand']
  #allocation4 [shape = 'f32[4,32]{1,0:T(4,128)}', space=vmem, size = 0x800, scoped, tag = 'scratch operand']
  %s0 = inlined_call_operand.hbm [shape: f32[1,4,1,32], index: 0, kind: input, shape index: {}]
  %s1 = inlined_call_operand.hbm [shape: f32[1,4,16], index: 1, kind: input, shape index: {}]
  %s2 = inlined_call_operand.hbm [shape: f32[1,4,16,32], index: 2, kind: input, shape index: {}]
  %s3 = inlined_call_operand.hbm [shape: bf16[32,32], index: 3, kind: input, shape index: {}]
  %s4 = inlined_call_operand.vmem [shape: f32[1,32], index: 4, kind: input, shape index: {}]
  %s5 = inlined_call_operand.hbm [shape: f32[1,4,16], index: 5, kind: output, shape index: {0}]
  %s6 = inlined_call_operand.hbm [shape: f32[1,4,32], index: 6, kind: output, shape index: {1}]
  %7 = xla_tuple %s5, %s6
  %s8 = sld [smem:[#allocation0]]
  $region62: #{tpu_custom_call.1} parent=0
    _
  %s10 = ssub.s32 1, %s8
  %s11 = scalar_select 0, %s10, %s8
  $region1: #{tpu_custom_call.1} parent=0
    #allocation5 [shape = 'u8[2048]{0}', space=vmem, size = 0x800, scoped, tag = 'input window, operand 0, single buffered']
    #allocation6 [shape = 's32[1]{0}', space=sflag, size = 0x4, scoped, tag = 'scoped memory for tpu_custom_call.1']
    #allocation7 [shape = 's32[1]{0}', space=sflag, size = 0x4, scoped, tag = 'scoped memory for tpu_custom_call.1']
    #allocation8 [shape = 'u8[2048]{0}', space=vmem, size = 0x800, scoped, tag = 'input window, operand 1, single buffered']
    #allocation9 [shape = 's32[1]{0}', space=sflag, size = 0x4, scoped, tag = 'scoped memory for tpu_custom_call.1']
    #allocation10 [shape = 'u8[32768]{0}', space=vmem, size = 0x8000, scoped, tag = 'input window, operand 2, single buffered']
    #allocation11 [shape = 'u8[8192]{0}', space=vmem, size = 0x2000, scoped, tag = 'input window, operand 3, single buffered']
    #allocation12 [shape = 's32[1]{0}', space=sflag, size = 0x4, scoped, tag = 'scoped memory for tpu_custom_call.1']
    #allocation13 [shape = 'u8[2048]{0}', space=vmem, size = 0x800, scoped, tag = 'output window, operand 0, single buffered']
    #allocation14 [shape = 'u8[2048]{0}', space=vmem, size = 0x800, scoped, tag = 'output window, operand 1, single buffered']
    #allocation15 [shape = 's32[1]{0}', space=sflag, size = 0x4, scoped, tag = 'scoped memory for tpu_custom_call.1']
    %12 = vsyncpa [#allocation6], 0
    %13 = vsyncpa [#allocation9], 0
    %14 = vsyncpa [#allocation12], 0
    %15 = vsyncpa [#allocation7], 0
    %16 = vsyncpa [#allocation15], 0
    // Predicated region
    $region2: #{tpu_custom_call.1} parent=1 // pred_check
      _
    $region3: #{tpu_custom_call.1} parent=1 // pred_check_branch
      %18 = sbr.rel (0) target = $region5
    $region4: #{tpu_custom_call.1} parent=1 // pred_region
      %s20 = ssub.s32 64, 64
      %21 = vsyncadd [#allocation6], %s20
      %s22 = sshll.u32 [#allocation5], 4
      %s23 = int_to_ptr.vmem [resolvable:$true] %s22
      %28 = dma.hbm_to_vmem [thread:$0]  %s0, 64, %s23, [#allocation6], 16, 16, 1
    $region5: #{tpu_custom_call.1} parent=1 // pred_fallthru
      _
    // Predicated region
    $region6: #{tpu_custom_call.1} parent=1 // pred_check
      _
    $region7: #{tpu_custom_call.1} parent=1 // pred_check_branch
      %30 = sbr.rel (0) target = $region9
    $region8: #{tpu_custom_call.1} parent=1 // pred_region
      %s32 = ssub.s32 64, 64
      %33 = vsyncadd [#allocation9], %s32
      %s35 = sshll.u32 [#allocation8], 4
      %s36 = int_to_ptr.vmem [resolvable:$true] %s35
      %38 = dma.hbm_to_vmem [thread:$0]  %s1, 64, %s36, [#allocation9]
    $region9: #{tpu_custom_call.1} parent=1 // pred_fallthru
      _
    // Predicated region
    $region10: #{tpu_custom_call.1} parent=1 // pred_check
      _
    $region11: #{tpu_custom_call.1} parent=1 // pred_check_branch
      %40 = sbr.rel (0) target = $region13
    $region12: #{tpu_custom_call.1} parent=1 // pred_region
      %s42 = ssub.s32 1024, 1024
      %43 = vsyncadd [#allocation9], %s42
      %s44 = sshll.u32 [#allocation10], 4
      %s45 = int_to_ptr.vmem [resolvable:$true] %s44
      %50 = dma.hbm_to_vmem [thread:$0]  %s2, 1024, %s45, [#allocation9], 128, 128, 8
    $region13: #{tpu_custom_call.1} parent=1 // pred_fallthru
      _
    // Predicated region
    $region14: #{tpu_custom_call.1} parent=1 // pred_check
      _
    $region15: #{tpu_custom_call.1} parent=1 // pred_check_branch
      %52 = sbr.rel (0) target = $region17
    $region16: #{tpu_custom_call.1} parent=1 // pred_region
      %s54 = ssub.s32 256, 256
      %55 = vsyncadd [#allocation12], %s54
      %s56 = sshll.u32 [#allocation11], 4
      %s57 = int_to_ptr.vmem [resolvable:$true] %s56
      %62 = dma.hbm_to_vmem [thread:$0]  %s3, 256, %s57, [#allocation12], 64, 64, 4
    $region17: #{tpu_custom_call.1} parent=1 // pred_fallthru
      _
    // Predicated region
    $region18: #{tpu_custom_call.1} parent=1 // pred_check
      _
    $region19: #{tpu_custom_call.1} parent=1 // pred_check_branch
      %64 = sbr.rel (0) target = $region21
    $region20: #{tpu_custom_call.1} parent=1 // pred_region
      _
    $region21: #{tpu_custom_call.1} parent=1 // pred_fallthru
      _
    // Predicated region
    $region22: #{tpu_custom_call.1} parent=1 // pred_check
      _
    $region23: #{tpu_custom_call.1} parent=1 // pred_check_branch
      %66 = sbr.rel (0) target = $region25
    $region24: #{tpu_custom_call.1} parent=1 // pred_region
      %67 = dma.done [#allocation6], 64
    $region25: #{tpu_custom_call.1} parent=1 // pred_fallthru
      _
    // Predicated region
    $region26: #{tpu_custom_call.1} parent=1 // pred_check
      _
    $region27: #{tpu_custom_call.1} parent=1 // pred_check_branch
      %69 = sbr.rel (0) target = $region29
    $region28: #{tpu_custom_call.1} parent=1 // pred_region
      %70 = dma.done [#allocation9], 64
    $region29: #{tpu_custom_call.1} parent=1 // pred_fallthru
      _
    // Predicated region
    $region30: #{tpu_custom_call.1} parent=1 // pred_check
      _
    $region31: #{tpu_custom_call.1} parent=1 // pred_check_branch
      %72 = sbr.rel (0) target = $region33
    $region32: #{tpu_custom_call.1} parent=1 // pred_region
      %73 = dma.done [#allocation9], 1024
    $region33: #{tpu_custom_call.1} parent=1 // pred_fallthru
      _
    // Predicated region
    $region34: #{tpu_custom_call.1} parent=1 // pred_check
      _
    $region35: #{tpu_custom_call.1} parent=1 // pred_check_branch
      %75 = sbr.rel (0) target = $region37
    $region36: #{tpu_custom_call.1} parent=1 // pred_region
      %76 = dma.done [#allocation12], 256
    $region37: #{tpu_custom_call.1} parent=1 // pred_fallthru
      _
    %p78 = scmp.eq.s32.totalorder 0, 0
    // Predicated region
    $region38: #{tpu_custom_call.1} parent=1 // pred_check
      %p79 = pneg %p78
    $region39: #{tpu_custom_call.1} parent=1 // pred_check_branch
      %81 = sbr.rel (%p79) target = $region41
    $region40: #{tpu_custom_call.1} parent=1 // pred_region
      %vm82 = vcmask 3072
      %83 = vst.msk [vmem:[#allocation2] sm:$0xf] %vm82, -inf
      %84 = vst.msk [vmem:[#allocation3] sm:$0xf] %vm82, 0.0
      %vm85 = vcmask 257024
      %86 = vst.msk [vmem:[#allocation4] sm:$0xf] %vm85, 0.0
    $region41: #{tpu_custom_call.1} parent=1 // pred_fallthru
      _
    %v87 = vld [vmem:[#allocation10] sm:$0xff]
    %v88 = vld [vmem:[#allocation10 + $0x8] sm:$0xff]
    %v89 = vld [vmem:[#allocation10 + $0x10] sm:$0xff]
    %v90 = vld [vmem:[#allocation10 + $0x18] sm:$0xff]
    %v91 = vld [vmem:[#allocation10 + $0x20] sm:$0xff]
    %v92 = vld [vmem:[#allocation10 + $0x28] sm:$0xff]
    %v93 = vld [vmem:[#allocation10 + $0x30] sm:$0xff]
    %v94 = vld [vmem:[#allocation10 + $0x38] sm:$0xff]
    %v95 = vld [vmem:[#allocation5] sm:$0x1]
    %v96 = vld [vmem:[#allocation5 + $0x1] sm:$0x1]
    %v97 = vld [vmem:[#allocation5 + $0x2] sm:$0x1]
    %v98 = vld [vmem:[#allocation5 + $0x3] sm:$0x1]
    %v99 = vld [vmem:[#allocation8] sm:$0xf]
    %v100 = vld [vmem:[%s4] sm:$0x1]
    %v101 = vpack.c.bf16 %v88, %v87
    %v102 = vpack.c.bf16 %v90, %v89
    %v103 = vpack.c.bf16 %v92, %v91
    %v104 = vpack.c.bf16 %v94, %v93
    %v105 = vld [vmem:[#allocation11] sm:$0xf]
    %v106 = vld [vmem:[#allocation11 + $0x4] sm:$0xf]
    %v107 = vld [vmem:[#allocation11 + $0x8] sm:$0xf]
    %v108 = vld [vmem:[#allocation11 + $0xc] sm:$0xf]
    %v113 = vunpack.c.l.b16 %v105
    %v114 = vunpack.c.l.b16 %v106
    %v115 = vunpack.c.l.b16 %v107
    %v116 = vunpack.c.l.b16 %v108
    %v117 = vpack.c.b16 %v114, %v113
    %v118 = vpack.c.b16 %v116, %v115
    %vm121 = vcmask 261120
    %v123 = vsel %vm121, %v101, 0
    %v126 = vsel %vm121, %v102, 0
    %v129 = vsel %vm121, %v103, 0
    %v132 = vsel %vm121, %v104, 0
    %134 = vmatprep.subr.bf16.mxu0 0
    %135 = vmatpush1.bf16.msra.mxu0 %v117
    %136 = vmatprep.subr.bf16.mxu0 0
    %137 = vmatpush1.bf16.msra.mxu0 %v118
    %138 = vmatprep.subr.bf16.mxu0 0
    %139 = vmatpush1.bf16.msra.mxu0 0
    %140 = vmatprep.subr.bf16.mxu0 0
    %141 = vmatpush1.bf16.msra.mxu0 0
    %142 = vmatprep.subr.bf16.mxu0 0
    %143 = vmatpush1.bf16.msra.mxu0 0
    %144 = vmatprep.subr.bf16.mxu0 0
    %145 = vmatpush1.bf16.msra.mxu0 0
    %146 = vmatprep.subr.bf16.mxu0 0
    %147 = vmatpush1.bf16.msra.mxu0 0
    %148 = vmatprep.subr.bf16.mxu0 0
    %149 = vmatpush1.bf16.msra.mxu0 0
    %150 = vmatprep.subr.bf16.mxu0 0
    %151 = vmatpush1.bf16.msra.mxu0 0
    %152 = vmatprep.subr.bf16.mxu0 0
    %153 = vmatpush1.bf16.msra.mxu0 0
    %154 = vmatprep.subr.bf16.mxu0 0
    %155 = vmatpush1.bf16.msra.mxu0 0
    %156 = vmatprep.subr.bf16.mxu0 0
    %157 = vmatpush1.bf16.msra.mxu0 0
    %158 = vmatprep.subr.bf16.mxu0 0
    %159 = vmatpush1.bf16.msra.mxu0 0
    %160 = vmatprep.subr.bf16.mxu0 0
    %161 = vmatpush1.bf16.msra.mxu0 0
    %162 = vmatprep.subr.bf16.mxu0 0
    %163 = vmatpush1.bf16.msra.mxu0 0
    %164 = vmatprep.subr.bf16.mxu0 0
    %165 = vmatpush1.bf16.msra.mxu0 0
    %166 = vmatprep.mubr.bf16.mxu0 0
    %167 = vmatmul.mubr.bf16.gmra.mrb[0].mxu0 %v123
    %v168 = vpop.f32.mrb[0].mxu0
    %v169 = vadd.f32 0.0, %v168
    %v170 = vpop.f32.mrb[0].mxu0
    %v171 = vpop.f32.mrb[0].mxu0
    %v172 = vadd.f32 0.0, %v171
    %v173 = vpop.f32.mrb[0].mxu0
    %174 = vmatprep.mubr.bf16.mxu0 0
    %175 = vmatmul.mubr.bf16.gmra.mrb[0].mxu0 %v126
    %v176 = vpop.f32.mrb[0].mxu0
    %v177 = vadd.f32 0.0, %v176
    %v178 = vpop.f32.mrb[0].mxu0
    %v179 = vpop.f32.mrb[0].mxu0
    %v180 = vadd.f32 0.0, %v179
    %v181 = vpop.f32.mrb[0].mxu0
    %182 = vmatprep.mubr.bf16.mxu0 0
    %183 = vmatmul.mubr.bf16.gmra.mrb[0].mxu0 %v129
    %v184 = vpop.f32.mrb[0].mxu0
    %v185 = vadd.f32 0.0, %v184
    %v186 = vpop.f32.mrb[0].mxu0
    %v187 = vpop.f32.mrb[0].mxu0
    %v188 = vadd.f32 0.0, %v187
    %v189 = vpop.f32.mrb[0].mxu0
    %190 = vmatprep.mubr.bf16.mxu0 0
    %191 = vmatmul.mubr.bf16.gmra.mrb[0].mxu0 %v132
    %v192 = vpop.f32.mrb[0].mxu0
    %v193 = vadd.f32 0.0, %v192
    %v194 = vpop.f32.mrb[0].mxu0
    %v195 = vpop.f32.mrb[0].mxu0
    %v196 = vadd.f32 0.0, %v195
    %v197 = vpop.f32.mrb[0].mxu0
    %198 = vdwg.mxu0
    %v203 = vlaneseq
    %v204 = vshrl.u32 %v203, 7
    %v205 = vsub.s32 0, %v204
    %v206 = vrot.slane %v95, %v205
    %v207 = vlaneseq
    %v208 = vshrl.u32 %v207, 7
    %v209 = vsub.s32 0, %v208
    %v210 = vrot.slane %v96, %v209
    %v211 = vlaneseq
    %v212 = vshrl.u32 %v211, 7
    %v213 = vsub.s32 0, %v212
    %v214 = vrot.slane %v97, %v213
    %v215 = vlaneseq
    %v216 = vshrl.u32 %v215, 7
    %v217 = vsub.s32 0, %v216
    %v218 = vrot.slane %v98, %v217
    %v223 = vadd.f32 %v169, %v206
    %v224 = vadd.f32 %v172, %v206
    %v225 = vadd.f32 %v177, %v210
    %v226 = vadd.f32 %v180, %v210
    %v227 = vadd.f32 %v185, %v214
    %v228 = vadd.f32 %v188, %v214
    %v229 = vadd.f32 %v193, %v218
    %v230 = vadd.f32 %v196, %v218
    %v231 = vtanh.pop %v223
    %v232 = vtanh.pop %v224
    %v233 = vtanh.pop %v225
    %v234 = vtanh.pop %v226
    %v235 = vtanh.pop %v227
    %v236 = vtanh.pop %v228
    %v237 = vtanh.pop %v229
    %v238 = vtanh.pop %v230
    %v240 = vlaneseq
    %v241 = vshrl.u32 %v240, 7
    %v242 = vsub.s32 0, %v241
    %v243 = vrot.slane %v100, %v242
    %v245 = vmul.f32 %v231, %v243
    %v246 = vmul.f32 %v232, %v243
    %v247 = vmul.f32 %v233, %v243
    %v248 = vmul.f32 %v234, %v243
    %v249 = vmul.f32 %v235, %v243
    %v250 = vmul.f32 %v236, %v243
    %v251 = vmul.f32 %v237, %v243
    %v252 = vmul.f32 %v238, %v243
    %v253 = vsel %vm121, %v245, 0.0
    %254 = vadd.xlane.f32.xlu0 %v253
    %v255 = vpop.xlane.xlu0 %254
    %v256 = vsel %vm121, %v246, 0.0
    %257 = vadd.xlane.f32.xlu0 %v256
    %v258 = vpop.xlane.xlu0 %257
    %v259 = vsel %vm121, %v247, 0.0
    %260 = vadd.xlane.f32.xlu0 %v259
    %v261 = vpop.xlane.xlu0 %260
    %v262 = vsel %vm121, %v248, 0.0
    %263 = vadd.xlane.f32.xlu0 %v262
    %v264 = vpop.xlane.xlu0 %263
    %v265 = vsel %vm121, %v249, 0.0
    %266 = vadd.xlane.f32.xlu0 %v265
    %v267 = vpop.xlane.xlu0 %266
    %v268 = vsel %vm121, %v250, 0.0
    %269 = vadd.xlane.f32.xlu0 %v268
    %v270 = vpop.xlane.xlu0 %269
    %v271 = vsel %vm121, %v251, 0.0
    %272 = vadd.xlane.f32.xlu0 %v271
    %v273 = vpop.xlane.xlu0 %272
    %v274 = vsel %vm121, %v252, 0.0
    %275 = vadd.xlane.f32.xlu0 %v274
    %v276 = vpop.xlane.xlu0 %275
    %v278 = vlaneseq
    %v279 = vshrl.u32 %v278, 7
    %v280 = vsub.s32 0, %v279
    %v281 = vrot.slane %v99, %v280
    %283 = vbcast.lane.b32.xlu0 %v281, 256
    %v284 = vpop.permute.xlu0 %283
    %s286 = sor.u32 256, 8
    %287 = vbcast.lane.b32.xlu0 %v281, %s286
    %v288 = vpop.permute.xlu0 %287
    %v289 = vlaneseq
    %v290 = vshrl.u32 %v289, 7
    %v291 = vsub.s32 1, %v290
    %v292 = vrot.slane %v99, %v291
    %294 = vbcast.lane.b32.xlu0 %v292, 256
    %v295 = vpop.permute.xlu0 %294
    %s297 = sor.u32 256, 8
    %298 = vbcast.lane.b32.xlu0 %v292, %s297
    %v299 = vpop.permute.xlu0 %298
    %v300 = vlaneseq
    %v301 = vshrl.u32 %v300, 7
    %v302 = vsub.s32 2, %v301
    %v303 = vrot.slane %v99, %v302
    %305 = vbcast.lane.b32.xlu0 %v303, 256
    %v306 = vpop.permute.xlu0 %305
    %s308 = sor.u32 256, 8
    %309 = vbcast.lane.b32.xlu0 %v303, %s308
    %v310 = vpop.permute.xlu0 %309
    %v311 = vlaneseq
    %v312 = vshrl.u32 %v311, 7
    %v313 = vsub.s32 3, %v312
    %v314 = vrot.slane %v99, %v313
    %316 = vbcast.lane.b32.xlu0 %v314, 256
    %v317 = vpop.permute.xlu0 %316
    %s319 = sor.u32 256, 8
    %320 = vbcast.lane.b32.xlu0 %v314, %s319
    %v321 = vpop.permute.xlu0 %320
    %v330 = vadd.f32 %v255, %v284
    %v331 = vadd.f32 %v258, %v288
    %v332 = vadd.f32 %v261, %v295
    %v333 = vadd.f32 %v264, %v299
    %v334 = vadd.f32 %v267, %v306
    %v335 = vadd.f32 %v270, %v310
    %v336 = vadd.f32 %v273, %v317
    %v337 = vadd.f32 %v276, %v321
    %346 = vset.pattern.permute.xlu0 0
    %347 = vperm.xlu0 %346, %v330
    %v348 = vpop.permute.xlu0 %347
    %349 = vset.pattern.permute.xlu0 0
    %350 = vperm.xlu0 %349, %v331
    %v351 = vpop.permute.xlu0 %350
    %352 = vset.pattern.permute.xlu0 0
    %353 = vperm.xlu0 %352, %v332
    %v354 = vpop.permute.xlu0 %353
    %355 = vset.pattern.permute.xlu0 0
    %356 = vperm.xlu0 %355, %v333
    %v357 = vpop.permute.xlu0 %356
    %358 = vset.pattern.permute.xlu0 0
    %359 = vperm.xlu0 %358, %v334
    %v360 = vpop.permute.xlu0 %359
    %361 = vset.pattern.permute.xlu0 0
    %362 = vperm.xlu0 %361, %v335
    %v363 = vpop.permute.xlu0 %362
    %364 = vset.pattern.permute.xlu0 0
    %365 = vperm.xlu0 %364, %v336
    %v366 = vpop.permute.xlu0 %365
    %367 = vset.pattern.permute.xlu0 0
    %368 = vperm.xlu0 %367, %v337
    %v369 = vpop.permute.xlu0 %368
    %v370 = vlaneseq
    %v371 = vand.u32 %v370, 127
    %v372 = vlaneseq
    %v373 = vshrl.u32 %v372, 7
    %v374 = vsub.s32 %v371, %v373
    %v375 = vrot.slane %v348, %v374
    %v376 = vadd.s32 %v371, 4294967288
    %v377 = vlaneseq
    %v378 = vshrl.u32 %v377, 7
    %v379 = vsub.s32 %v376, %v378
    %v380 = vrot.slane %v351, %v379
    %vm381 = vcmask 130112
    %v382 = vsel %vm381, %v380, %v375
    %v383 = vlaneseq
    %v384 = vshrl.u32 %v383, 7
    %v385 = vsub.s32 %v371, %v384
    %v386 = vrot.slane %v354, %v385
    %v387 = vlaneseq
    %v388 = vshrl.u32 %v387, 7
    %v389 = vsub.s32 %v376, %v388
    %v390 = vrot.slane %v357, %v389
    %v391 = vsel %vm381, %v390, %v386
    %v392 = vlaneseq
    %v393 = vshrl.u32 %v392, 7
    %v394 = vsub.s32 %v371, %v393
    %v395 = vrot.slane %v360, %v394
    %v396 = vlaneseq
    %v397 = vshrl.u32 %v396, 7
    %v398 = vsub.s32 %v376, %v397
    %v399 = vrot.slane %v363, %v398
    %v400 = vsel %vm381, %v399, %v395
    %v401 = vlaneseq
    %v402 = vshrl.u32 %v401, 7
    %v403 = vsub.s32 %v371, %v402
    %v404 = vrot.slane %v366, %v403
    %v405 = vlaneseq
    %v406 = vshrl.u32 %v405, 7
    %v407 = vsub.s32 %v376, %v406
    %v408 = vrot.slane %v369, %v407
    %v409 = vsel %vm381, %v408, %v404
    %vm410 = vcmask 1041409
    %v411 = vsel %vm410, %v391, %v382
    %vm412 = vcmask 1042434
    %v413 = vsel %vm412, %v400, %v411
    %vm414 = vcmask 1043459
    %v415 = vsel %vm414, %v409, %v413
    %vm417 = vcmask 125952
    %418 = vst.msk [vmem:[#allocation13] sm:$0xf] %vm417, %v415
    %v419 = vld [vmem:[#allocation2] sm:$0xf]
    %v420 = vsel %vm417, %v415, -inf
    %421 = vmax.xlane.f32.xlu0 %v420
    %v422 = vpop.xlane.xlu0 %421
    %v423 = vmax.f32 %v419, %v422
    %v424 = vsub.f32 %v419, %v423
    %v425 = vmul.f32 %v424, 1.442695
    %v426 = vpow.pop %v425
    %428 = vset.pattern.permute.xlu0 0
    %429 = vperm.xlu0 %428, %v423
    %v430 = vpop.permute.xlu0 %429
    %v431 = vlaneseq
    %v432 = vshrl.u32 %v431, 7
    %v433 = vsub.s32 0, %v432
    %v434 = vrot.slane %v430, %v433
    %v435 = vlaneseq
    %v436 = vshrl.u32 %v435, 7
    %v437 = vsub.s32 1, %v436
    %v438 = vrot.slane %v430, %v437
    %v439 = vlaneseq
    %v440 = vshrl.u32 %v439, 7
    %v441 = vsub.s32 2, %v440
    %v442 = vrot.slane %v430, %v441
    %v443 = vlaneseq
    %v444 = vshrl.u32 %v443, 7
    %v445 = vsub.s32 3, %v444
    %v446 = vrot.slane %v430, %v445
    %v451 = vsub.f32 %v330, %v434
    %v452 = vsub.f32 %v331, %v434
    %v453 = vsub.f32 %v332, %v438
    %v454 = vsub.f32 %v333, %v438
    %v455 = vsub.f32 %v334, %v442
    %v456 = vsub.f32 %v335, %v442
    %v457 = vsub.f32 %v336, %v446
    %v458 = vsub.f32 %v337, %v446
    %v459 = vmul.f32 %v451, 1.442695
    %v460 = vpow.pop %v459
    %v461 = vmul.f32 %v452, 1.442695
    %v462 = vpow.pop %v461
    %v463 = vmul.f32 %v453, 1.442695
    %v464 = vpow.pop %v463
    %v465 = vmul.f32 %v454, 1.442695
    %v466 = vpow.pop %v465
    %v467 = vmul.f32 %v455, 1.442695
    %v468 = vpow.pop %v467
    %v469 = vmul.f32 %v456, 1.442695
    %v470 = vpow.pop %v469
    %v471 = vmul.f32 %v457, 1.442695
    %v472 = vpow.pop %v471
    %v473 = vmul.f32 %v458, 1.442695
    %v474 = vpow.pop %v473
    %v475 = vld [vmem:[#allocation3] sm:$0xf]
    %v476 = vmul.f32 %v426, %v475
    %485 = vset.pattern.permute.xlu0 0
    %486 = vperm.xlu0 %485, %v460
    %v487 = vpop.permute.xlu0 %486
    %488 = vset.pattern.permute.xlu0 0
    %489 = vperm.xlu0 %488, %v462
    %v490 = vpop.permute.xlu0 %489
    %491 = vset.pattern.permute.xlu0 0
    %492 = vperm.xlu0 %491, %v464
    %v493 = vpop.permute.xlu0 %492
    %494 = vset.pattern.permute.xlu0 0
    %495 = vperm.xlu0 %494, %v466
    %v496 = vpop.permute.xlu0 %495
    %497 = vset.pattern.permute.xlu0 0
    %498 = vperm.xlu0 %497, %v468
    %v499 = vpop.permute.xlu0 %498
    %500 = vset.pattern.permute.xlu0 0
    %501 = vperm.xlu0 %500, %v470
    %v502 = vpop.permute.xlu0 %501
    %503 = vset.pattern.permute.xlu0 0
    %504 = vperm.xlu0 %503, %v472
    %v505 = vpop.permute.xlu0 %504
    %506 = vset.pattern.permute.xlu0 0
    %507 = vperm.xlu0 %506, %v474
    %v508 = vpop.permute.xlu0 %507
    %v509 = vlaneseq
    %v510 = vshrl.u32 %v509, 7
    %v511 = vsub.s32 %v371, %v510
    %v512 = vrot.slane %v487, %v511
    %v513 = vlaneseq
    %v514 = vshrl.u32 %v513, 7
    %v515 = vsub.s32 %v376, %v514
    %v516 = vrot.slane %v490, %v515
    %v517 = vsel %vm381, %v516, %v512
    %v518 = vlaneseq
    %v519 = vshrl.u32 %v518, 7
    %v520 = vsub.s32 %v371, %v519
    %v521 = vrot.slane %v493, %v520
    %v522 = vlaneseq
    %v523 = vshrl.u32 %v522, 7
    %v524 = vsub.s32 %v376, %v523
    %v525 = vrot.slane %v496, %v524
    %v526 = vsel %vm381, %v525, %v521
    %v527 = vlaneseq
    %v528 = vshrl.u32 %v527, 7
    %v529 = vsub.s32 %v371, %v528
    %v530 = vrot.slane %v499, %v529
    %v531 = vlaneseq
    %v532 = vshrl.u32 %v531, 7
    %v533 = vsub.s32 %v376, %v532
    %v534 = vrot.slane %v502, %v533
    %v535 = vsel %vm381, %v534, %v530
    %v536 = vlaneseq
    %v537 = vshrl.u32 %v536, 7
    %v538 = vsub.s32 %v371, %v537
    %v539 = vrot.slane %v505, %v538
    %v540 = vlaneseq
    %v541 = vshrl.u32 %v540, 7
    %v542 = vsub.s32 %v376, %v541
    %v543 = vrot.slane %v508, %v542
    %v544 = vsel %vm381, %v543, %v539
    %v545 = vsel %vm410, %v526, %v517
    %v546 = vsel %vm412, %v535, %v545
    %v547 = vsel %vm414, %v544, %v546
    %v549 = vsel %vm417, %v547, 0.0
    %550 = vadd.xlane.f32.xlu0 %v549
    %v551 = vpop.xlane.xlu0 %550
    %v552 = vadd.f32 %v476, %v551
    %vm553 = vcmask 3072
    %554 = vst.msk [vmem:[#allocation3] sm:$0xf] %vm553, %v552
    %vm555 = vcmask 130048
    %v556 = vsel %vm555, %v517, 0
    %558 = vmatprep.subr.mxu0 0.0
    %559 = vmatpush1.msra.mxu0 %v87
    %560 = vmatprep.subr.mxu0 0.0
    %561 = vmatpush1.msra.mxu0 %v88
    %562 = vmatprep.subr.mxu0 0.0
    %563 = vmatpush1.msra.mxu0 0.0
    %564 = vmatprep.subr.mxu0 0.0
    %565 = vmatpush1.msra.mxu0 0.0
    %566 = vmatprep.subr.mxu0 0.0
    %567 = vmatpush1.msra.mxu0 0.0
    %568 = vmatprep.subr.mxu0 0.0
    %569 = vmatpush1.msra.mxu0 0.0
    %570 = vmatprep.subr.mxu0 0.0
    %571 = vmatpush1.msra.mxu0 0.0
    %572 = vmatprep.subr.mxu0 0.0
    %573 = vmatpush1.msra.mxu0 0.0
    %574 = vmatprep.subr.mxu0 0.0
    %575 = vmatpush1.msra.mxu0 0.0
    %576 = vmatprep.subr.mxu0 0.0
    %577 = vmatpush1.msra.mxu0 0.0
    %578 = vmatprep.subr.mxu0 0.0
    %579 = vmatpush1.msra.mxu0 0.0
    %580 = vmatprep.subr.mxu0 0.0
    %581 = vmatpush1.msra.mxu0 0.0
    %582 = vmatprep.subr.mxu0 0.0
    %583 = vmatpush1.msra.mxu0 0.0
    %584 = vmatprep.subr.mxu0 0.0
    %585 = vmatpush1.msra.mxu0 0.0
    %586 = vmatprep.subr.mxu0 0.0
    %587 = vmatpush1.msra.mxu0 0.0
    %588 = vmatprep.subr.mxu0 0.0
    %589 = vmatpush1.msra.mxu0 0.0
    %590 = vmatprep.subr.mxu0 0.0
    %591 = vmatpush1.msra.mxu0 0.0
    %592 = vmatprep.subr.mxu0 0.0
    %593 = vmatpush1.msra.mxu0 0.0
    %594 = vmatprep.subr.mxu0 0.0
    %595 = vmatpush1.msra.mxu0 0.0
    %596 = vmatprep.subr.mxu0 0.0
    %597 = vmatpush1.msra.mxu0 0.0
    %598 = vmatprep.subr.mxu0 0.0
    %599 = vmatpush1.msra.mxu0 0.0
    %600 = vmatprep.subr.mxu0 0.0
    %601 = vmatpush1.msra.mxu0 0.0
    %602 = vmatprep.subr.mxu0 0.0
    %603 = vmatpush1.msra.mxu0 0.0
    %604 = vmatprep.subr.mxu0 0.0
    %605 = vmatpush1.msra.mxu0 0.0
    %606 = vmatprep.subr.mxu0 0.0
    %607 = vmatpush1.msra.mxu0 0.0
    %608 = vmatprep.subr.mxu0 0.0
    %609 = vmatpush1.msra.mxu0 0.0
    %610 = vmatprep.subr.mxu0 0.0
    %611 = vmatpush1.msra.mxu0 0.0
    %612 = vmatprep.subr.mxu0 0.0
    %613 = vmatpush1.msra.mxu0 0.0
    %614 = vmatprep.subr.mxu0 0.0
    %615 = vmatpush1.msra.mxu0 0.0
    %616 = vmatprep.subr.mxu0 0.0
    %617 = vmatpush1.msra.mxu0 0.0
    %618 = vmatprep.subr.mxu0 0.0
    %619 = vmatpush1.msra.mxu0 0.0
    %620 = vmatprep.subr.mxu0 0.0
    %621 = vmatpush1.msra.mxu0 0.0
    %622 = vmatprep.mubr.f32.mxu0 0.0
    %623 = vmatmul.mubr.f32.gmra.mrb[0].mxu0 %v556
    %v624 = vpop.f32.mrb[0].mxu0
    %v625 = vadd.f32 0.0, %v624
    %v626 = vpop.f32.mrb[0].mxu0
    %627 = vdwg.mxu0
    %v628 = vsel %vm555, %v526, 0
    %630 = vmatprep.subr.mxu0 0.0
    %631 = vmatpush1.msra.mxu0 %v89
    %632 = vmatprep.subr.mxu0 0.0
    %633 = vmatpush1.msra.mxu0 %v90
    %634 = vmatprep.subr.mxu0 0.0
    %635 = vmatpush1.msra.mxu0 0.0
    %636 = vmatprep.subr.mxu0 0.0
    %637 = vmatpush1.msra.mxu0 0.0
    %638 = vmatprep.subr.mxu0 0.0
    %639 = vmatpush1.msra.mxu0 0.0
    %640 = vmatprep.subr.mxu0 0.0
    %641 = vmatpush1.msra.mxu0 0.0
    %642 = vmatprep.subr.mxu0 0.0
    %643 = vmatpush1.msra.mxu0 0.0
    %644 = vmatprep.subr.mxu0 0.0
    %645 = vmatpush1.msra.mxu0 0.0
    %646 = vmatprep.subr.mxu0 0.0
    %647 = vmatpush1.msra.mxu0 0.0
    %648 = vmatprep.subr.mxu0 0.0
    %649 = vmatpush1.msra.mxu0 0.0
    %650 = vmatprep.subr.mxu0 0.0
    %651 = vmatpush1.msra.mxu0 0.0
    %652 = vmatprep.subr.mxu0 0.0
    %653 = vmatpush1.msra.mxu0 0.0
    %654 = vmatprep.subr.mxu0 0.0
    %655 = vmatpush1.msra.mxu0 0.0
    %656 = vmatprep.subr.mxu0 0.0
    %657 = vmatpush1.msra.mxu0 0.0
    %658 = vmatprep.subr.mxu0 0.0
    %659 = vmatpush1.msra.mxu0 0.0
    %660 = vmatprep.subr.mxu0 0.0
    %661 = vmatpush1.msra.mxu0 0.0
    %662 = vmatprep.subr.mxu0 0.0
    %663 = vmatpush1.msra.mxu0 0.0
    %664 = vmatprep.subr.mxu0 0.0
    %665 = vmatpush1.msra.mxu0 0.0
    %666 = vmatprep.subr.mxu0 0.0
    %667 = vmatpush1.msra.mxu0 0.0
    %668 = vmatprep.subr.mxu0 0.0
    %669 = vmatpush1.msra.mxu0 0.0
    %670 = vmatprep.subr.mxu0 0.0
    %671 = vmatpush1.msra.mxu0 0.0
    %672 = vmatprep.subr.mxu0 0.0
    %673 = vmatpush1.msra.mxu0 0.0
    %674 = vmatprep.subr.mxu0 0.0
    %675 = vmatpush1.msra.mxu0 0.0
    %676 = vmatprep.subr.mxu0 0.0
    %677 = vmatpush1.msra.mxu0 0.0
    %678 = vmatprep.subr.mxu0 0.0
    %679 = vmatpush1.msra.mxu0 0.0
    %680 = vmatprep.subr.mxu0 0.0
    %681 = vmatpush1.msra.mxu0 0.0
    %682 = vmatprep.subr.mxu0 0.0
    %683 = vmatpush1.msra.mxu0 0.0
    %684 = vmatprep.subr.mxu0 0.0
    %685 = vmatpush1.msra.mxu0 0.0
    %686 = vmatprep.subr.mxu0 0.0
    %687 = vmatpush1.msra.mxu0 0.0
    %688 = vmatprep.subr.mxu0 0.0
    %689 = vmatpush1.msra.mxu0 0.0
    %690 = vmatprep.subr.mxu0 0.0
    %691 = vmatpush1.msra.mxu0 0.0
    %692 = vmatprep.subr.mxu0 0.0
    %693 = vmatpush1.msra.mxu0 0.0
    %694 = vmatprep.mubr.f32.mxu0 0.0
    %695 = vmatmul.mubr.f32.gmra.mrb[0].mxu0 %v628
    %v696 = vpop.f32.mrb[0].mxu0
    %v697 = vadd.f32 0.0, %v696
    %v698 = vpop.f32.mrb[0].mxu0
    %699 = vdwg.mxu0
    %v700 = vsel %vm555, %v535, 0
    %702 = vmatprep.subr.mxu0 0.0
    %703 = vmatpush1.msra.mxu0 %v91
    %704 = vmatprep.subr.mxu0 0.0
    %705 = vmatpush1.msra.mxu0 %v92
    %706 = vmatprep.subr.mxu0 0.0
    %707 = vmatpush1.msra.mxu0 0.0
    %708 = vmatprep.subr.mxu0 0.0
    %709 = vmatpush1.msra.mxu0 0.0
    %710 = vmatprep.subr.mxu0 0.0
    %711 = vmatpush1.msra.mxu0 0.0
    %712 = vmatprep.subr.mxu0 0.0
    %713 = vmatpush1.msra.mxu0 0.0
    %714 = vmatprep.subr.mxu0 0.0
    %715 = vmatpush1.msra.mxu0 0.0
    %716 = vmatprep.subr.mxu0 0.0
    %717 = vmatpush1.msra.mxu0 0.0
    %718 = vmatprep.subr.mxu0 0.0
    %719 = vmatpush1.msra.mxu0 0.0
    %720 = vmatprep.subr.mxu0 0.0
    %721 = vmatpush1.msra.mxu0 0.0
    %722 = vmatprep.subr.mxu0 0.0
    %723 = vmatpush1.msra.mxu0 0.0
    %724 = vmatprep.subr.mxu0 0.0
    %725 = vmatpush1.msra.mxu0 0.0
    %726 = vmatprep.subr.mxu0 0.0
    %727 = vmatpush1.msra.mxu0 0.0
    %728 = vmatprep.subr.mxu0 0.0
    %729 = vmatpush1.msra.mxu0 0.0
    %730 = vmatprep.subr.mxu0 0.0
    %731 = vmatpush1.msra.mxu0 0.0
    %732 = vmatprep.subr.mxu0 0.0
    %733 = vmatpush1.msra.mxu0 0.0
    %734 = vmatprep.subr.mxu0 0.0
    %735 = vmatpush1.msra.mxu0 0.0
    %736 = vmatprep.subr.mxu0 0.0
    %737 = vmatpush1.msra.mxu0 0.0
    %738 = vmatprep.subr.mxu0 0.0
    %739 = vmatpush1.msra.mxu0 0.0
    %740 = vmatprep.subr.mxu0 0.0
    %741 = vmatpush1.msra.mxu0 0.0
    %742 = vmatprep.subr.mxu0 0.0
    %743 = vmatpush1.msra.mxu0 0.0
    %744 = vmatprep.subr.mxu0 0.0
    %745 = vmatpush1.msra.mxu0 0.0
    %746 = vmatprep.subr.mxu0 0.0
    %747 = vmatpush1.msra.mxu0 0.0
    %748 = vmatprep.subr.mxu0 0.0
    %749 = vmatpush1.msra.mxu0 0.0
    %750 = vmatprep.subr.mxu0 0.0
    %751 = vmatpush1.msra.mxu0 0.0
    %752 = vmatprep.subr.mxu0 0.0
    %753 = vmatpush1.msra.mxu0 0.0
    %754 = vmatprep.subr.mxu0 0.0
    %755 = vmatpush1.msra.mxu0 0.0
    %756 = vmatprep.subr.mxu0 0.0
    %757 = vmatpush1.msra.mxu0 0.0
    %758 = vmatprep.subr.mxu0 0.0
    %759 = vmatpush1.msra.mxu0 0.0
    %760 = vmatprep.subr.mxu0 0.0
    %761 = vmatpush1.msra.mxu0 0.0
    %762 = vmatprep.subr.mxu0 0.0
    %763 = vmatpush1.msra.mxu0 0.0
    %764 = vmatprep.subr.mxu0 0.0
    %765 = vmatpush1.msra.mxu0 0.0
    %766 = vmatprep.mubr.f32.mxu0 0.0
    %767 = vmatmul.mubr.f32.gmra.mrb[0].mxu0 %v700
    %v768 = vpop.f32.mrb[0].mxu0
    %v769 = vadd.f32 0.0, %v768
    %v770 = vpop.f32.mrb[0].mxu0
    %771 = vdwg.mxu0
    %v772 = vsel %vm555, %v544, 0
    %774 = vmatprep.subr.mxu0 0.0
    %775 = vmatpush1.msra.mxu0 %v93
    %776 = vmatprep.subr.mxu0 0.0
    %777 = vmatpush1.msra.mxu0 %v94
    %778 = vmatprep.subr.mxu0 0.0
    %779 = vmatpush1.msra.mxu0 0.0
    %780 = vmatprep.subr.mxu0 0.0
    %781 = vmatpush1.msra.mxu0 0.0
    %782 = vmatprep.subr.mxu0 0.0
    %783 = vmatpush1.msra.mxu0 0.0
    %784 = vmatprep.subr.mxu0 0.0
    %785 = vmatpush1.msra.mxu0 0.0
    %786 = vmatprep.subr.mxu0 0.0
    %787 = vmatpush1.msra.mxu0 0.0
    %788 = vmatprep.subr.mxu0 0.0
    %789 = vmatpush1.msra.mxu0 0.0
    %790 = vmatprep.subr.mxu0 0.0
    %791 = vmatpush1.msra.mxu0 0.0
    %792 = vmatprep.subr.mxu0 0.0
    %793 = vmatpush1.msra.mxu0 0.0
    %794 = vmatprep.subr.mxu0 0.0
    %795 = vmatpush1.msra.mxu0 0.0
    %796 = vmatprep.subr.mxu0 0.0
    %797 = vmatpush1.msra.mxu0 0.0
    %798 = vmatprep.subr.mxu0 0.0
    %799 = vmatpush1.msra.mxu0 0.0
    %800 = vmatprep.subr.mxu0 0.0
    %801 = vmatpush1.msra.mxu0 0.0
    %802 = vmatprep.subr.mxu0 0.0
    %803 = vmatpush1.msra.mxu0 0.0
    %804 = vmatprep.subr.mxu0 0.0
    %805 = vmatpush1.msra.mxu0 0.0
    %806 = vmatprep.subr.mxu0 0.0
    %807 = vmatpush1.msra.mxu0 0.0
    %808 = vmatprep.subr.mxu0 0.0
    %809 = vmatpush1.msra.mxu0 0.0
    %810 = vmatprep.subr.mxu0 0.0
    %811 = vmatpush1.msra.mxu0 0.0
    %812 = vmatprep.subr.mxu0 0.0
    %813 = vmatpush1.msra.mxu0 0.0
    %814 = vmatprep.subr.mxu0 0.0
    %815 = vmatpush1.msra.mxu0 0.0
    %816 = vmatprep.subr.mxu0 0.0
    %817 = vmatpush1.msra.mxu0 0.0
    %818 = vmatprep.subr.mxu0 0.0
    %819 = vmatpush1.msra.mxu0 0.0
    %820 = vmatprep.subr.mxu0 0.0
    %821 = vmatpush1.msra.mxu0 0.0
    %822 = vmatprep.subr.mxu0 0.0
    %823 = vmatpush1.msra.mxu0 0.0
    %824 = vmatprep.subr.mxu0 0.0
    %825 = vmatpush1.msra.mxu0 0.0
    %826 = vmatprep.subr.mxu0 0.0
    %827 = vmatpush1.msra.mxu0 0.0
    %828 = vmatprep.subr.mxu0 0.0
    %829 = vmatpush1.msra.mxu0 0.0
    %830 = vmatprep.subr.mxu0 0.0
    %831 = vmatpush1.msra.mxu0 0.0
    %832 = vmatprep.subr.mxu0 0.0
    %833 = vmatpush1.msra.mxu0 0.0
    %834 = vmatprep.subr.mxu0 0.0
    %835 = vmatpush1.msra.mxu0 0.0
    %836 = vmatprep.subr.mxu0 0.0
    %837 = vmatpush1.msra.mxu0 0.0
    %838 = vmatprep.mubr.f32.mxu0 0.0
    %839 = vmatmul.mubr.f32.gmra.mrb[0].mxu0 %v772
    %v840 = vpop.f32.mrb[0].mxu0
    %v841 = vadd.f32 0.0, %v840
    %v842 = vpop.f32.mrb[0].mxu0
    %843 = vdwg.mxu0
    %v844 = vld [vmem:[#allocation4] sm:$0xf]
    %846 = vset.pattern.permute.xlu0 0
    %847 = vperm.xlu0 %846, %v426
    %v848 = vpop.permute.xlu0 %847
    %v850 = vmul.f32 %v848, %v844
    %v855 = vrot.slane %v697, 7
    %v856 = vsel %vm410, %v855, %v625
    %v857 = vrot.slane %v769, 6
    %v858 = vsel %vm412, %v857, %v856
    %v859 = vrot.slane %v841, 5
    %v860 = vsel %vm414, %v859, %v858
    %v862 = vadd.f32 %v850, %v860
    %vm863 = vcmask 257024
    %864 = vst.msk [vmem:[#allocation4] sm:$0xf] %vm863, %v862
    %865 = vst.msk [vmem:[#allocation2] sm:$0xf] %vm553, %v423
    // Predicated region
    $region42: #{tpu_custom_call.1} parent=1 // pred_check
      %p866 = pneg %p78
    $region43: #{tpu_custom_call.1} parent=1 // pred_check_branch
      %868 = sbr.rel (%p866) target = $region45
    $region44: #{tpu_custom_call.1} parent=1 // pred_region
      %v869 = vld [vmem:[#allocation4] sm:$0xf]
      %v870 = vld [vmem:[#allocation3] sm:$0xf]
      %v871 = vrcp.pop %v870
      %873 = vset.pattern.permute.xlu0 0
      %874 = vperm.xlu0 %873, %v871
      %v875 = vpop.permute.xlu0 %874
      %v877 = vmul.f32 %v869, %v875
      %878 = vst.msk [vmem:[#allocation14] sm:$0xf] %vm863, %v877
    $region45: #{tpu_custom_call.1} parent=1 // pred_fallthru
      _
    // Predicated region
    $region46: #{tpu_custom_call.1} parent=1 // pred_check
      _
    $region47: #{tpu_custom_call.1} parent=1 // pred_check_branch
      %880 = sbr.rel (0) target = $region49
    $region48: #{tpu_custom_call.1} parent=1 // pred_region
      %s882 = ssub.s32 64, 64
      %883 = vsyncadd [#allocation7], %s882
      %s885 = sshll.u32 [#allocation13], 4
      %s886 = int_to_ptr.vmem [resolvable:$true] %s885
      %888 = dma.vmem_to_hbm [thread:$0]  %s886, 64, %s5, [#allocation7]
    $region49: #{tpu_custom_call.1} parent=1 // pred_fallthru
      _
    // Predicated region
    $region50: #{tpu_custom_call.1} parent=1 // pred_check
      _
    $region51: #{tpu_custom_call.1} parent=1 // pred_check_branch
      %890 = sbr.rel (0) target = $region53
    $region52: #{tpu_custom_call.1} parent=1 // pred_region
      %s892 = ssub.s32 64, 64
      %893 = vsyncadd [#allocation15], %s892
      %s895 = sshll.u32 [#allocation14], 4
      %s896 = int_to_ptr.vmem [resolvable:$true] %s895
      %898 = dma.vmem_to_hbm [thread:$0]  %s896, 64, %s6, [#allocation15]
    $region53: #{tpu_custom_call.1} parent=1 // pred_fallthru
      _
    // Predicated region
    $region54: #{tpu_custom_call.1} parent=1 // pred_check
      _
    $region55: #{tpu_custom_call.1} parent=1 // pred_check_branch
      %900 = sbr.rel (0) target = $region57
    $region56: #{tpu_custom_call.1} parent=1 // pred_region
      %901 = dma.done [#allocation7], 64
    $region57: #{tpu_custom_call.1} parent=1 // pred_fallthru
      _
    // Predicated region
    $region58: #{tpu_custom_call.1} parent=1 // pred_check
      _
    $region59: #{tpu_custom_call.1} parent=1 // pred_check_branch
      %903 = sbr.rel (0) target = $region61
    $region60: #{tpu_custom_call.1} parent=1 // pred_region
      %904 = dma.done [#allocation15], 64
    $region61: #{tpu_custom_call.1} parent=1 // pred_fallthru
      _
    %905 = vsyncpa [#allocation6], 1
    %906 = vsyncpa [#allocation9], 1
    %907 = vsyncpa [#allocation12], 1
    %908 = vsyncpa [#allocation7], 1
    %909 = vsyncpa [#allocation15], 1

</llo_original>
